<compile_context>
chip_gen: v7x
topology: tpu7x:2x2x1
jax: 0.10.0
libtpu: 0.0.40
codegen_flags: <defaults>
</compile_context>

<pallas_src>
import jax
import jax.numpy as jnp
from jax.experimental import pallas as pl
from jax.experimental.pallas import tpu as pltpu


def _multitask_loss_kernel(x_ref, out_ref):
    # x_ref: (2, T) f32 in VMEM (full array, no grid).
    #   row 0 = per-task losses, row 1 = log_vars.
    # out_ref: (1, 1) f32 in SMEM.
    x = x_ref[...]                       # (2, T)
    ls = x[0:1, :]                       # (1, T) losses
    lv = x[1:2, :]                       # (1, T) log_vars
    per_task = jnp.exp(-lv) * ls + lv    # precision * loss + log_var
    out_ref[0, 0] = jnp.sum(per_task)    # scalar store to SMEM


def _forward_pallas(losses, log_vars):
    """losses, log_vars: (task_num,) f32 arrays -> scalar total loss."""
    task_num = log_vars.shape[0]
    # Single packed input: (2, task_num), one DMA instead of two.
    packed = jnp.stack(
        [losses.astype(jnp.float32), log_vars.astype(jnp.float32)], axis=0)

    out = pl.pallas_call(
        _multitask_loss_kernel,
        out_shape=jax.ShapeDtypeStruct((1, 1), jnp.float32),
        in_specs=[pl.BlockSpec(memory_space=pltpu.MemorySpace.VMEM)],
        out_specs=pl.BlockSpec(memory_space=pltpu.MemorySpace.SMEM),
        cost_estimate=pl.CostEstimate(
            flops=4 * task_num,
            transcendentals=task_num,
            bytes_accessed=2 * task_num * 4 + 4,
        ),
    )(packed)
    return out[0, 0]


@jax.custom_vjp
def multitask_loss_packed(losses, log_vars):
    """Differentiable uncertainty-weighted multi-task loss.

    Args:
      losses:   (task_num,) f32 per-task scalar losses (already packed).
      log_vars: (task_num,) f32 learnable log-variance parameters.
    Returns:
      scalar total loss (f32).

    Note: custom_vjp disables forward-mode (jvp) differentiation through this
    loss; reverse-mode (jax.grad) is the intended training path.
    """
    return _forward_pallas(losses, log_vars)


def _mtl_fwd(losses, log_vars):
    return _forward_pallas(losses, log_vars), (losses, log_vars)


def _mtl_bwd(res, g):
    losses, log_vars = res
    precision = jnp.exp(-log_vars.astype(jnp.float32))
    d_losses = g * precision                                          # d/d loss_i
    d_log_vars = g * (1.0 - precision * losses.astype(jnp.float32))   # d/d lv_i
    return d_losses.astype(losses.dtype), d_log_vars.astype(log_vars.dtype)


multitask_loss_packed.defvjp(_mtl_fwd, _mtl_bwd)


def multitask_loss(list_of_losses, log_vars):
    """Compatibility wrapper matching MultiTaskLossWrapper.forward.

    Prefer passing an already-packed (task_num,) array as `list_of_losses`;
    a Python list/tuple of scalars is packed once here (legacy path).
    """
    if isinstance(list_of_losses, (list, tuple)):
        losses = jnp.stack(
            [jnp.asarray(l, jnp.float32).reshape(()) for l in list_of_losses])
    else:
        losses = jnp.asarray(list_of_losses, jnp.float32).reshape(-1)
    return multitask_loss_packed(losses, log_vars)


if __name__ == "__main__":
    task_num = 4

    # Parameter init, matching nn.Parameter(torch.zeros(task_num)).
    log_vars = jnp.zeros((task_num,), dtype=jnp.float32)

    # Deterministic example per-task scalar losses (already packed).
    key = jax.random.PRNGKey(0)
    losses = jax.random.uniform(key, (task_num,), dtype=jnp.float32,
                                minval=0.1, maxval=2.0)

    total = multitask_loss(losses, log_vars)
    total = jax.block_until_ready(total)

    # Pure-JAX reference check of the forward semantics.
    ref = jnp.sum(jnp.exp(-log_vars) * losses + log_vars)
    assert jnp.allclose(total, ref, rtol=1e-6, atol=1e-6), (total, ref)

    # Gradient check (log_vars is a learnable parameter -> must be trainable).
    g_kernel = jax.grad(lambda lv: multitask_loss_packed(losses, lv))(log_vars)
    g_ref = jax.grad(
        lambda lv: jnp.sum(jnp.exp(-lv) * losses + lv))(log_vars)
    g_kernel = jax.block_until_ready(g_kernel)
    assert jnp.allclose(g_kernel, g_ref, rtol=1e-6, atol=1e-6), (g_kernel, g_ref)

    print("KERNEL_OK")
</pallas_src>

<mosaic_0001>
module attributes {stable_mosaic.version = 11 : i64} {
  func.func @_multitask_loss_kernel(%arg0: memref<2x4xf32, #tpu.memory_space<vmem>>, %arg1: memref<1x1xf32, #tpu.memory_space<smem>>) attributes {dimension_semantics = [], scalar_prefetch = 0 : i64, scratch_operands = 0 : i64, tpu.core_type = #tpu.core_type<tc>} {
    %c0 = arith.constant 0 : index
    %c0_0 = arith.constant 0 : index
    %0 = vector.load %arg0[%c0, %c0_0] : memref<2x4xf32, #tpu.memory_space<vmem>>, vector<2x4xf32>
    %1 = vector.extract_strided_slice %0 {offsets = [0, 0], sizes = [1, 4], strides = [1, 1]} : vector<2x4xf32> to vector<1x4xf32>
    %2 = vector.extract_strided_slice %0 {offsets = [1, 0], sizes = [1, 4], strides = [1, 1]} : vector<2x4xf32> to vector<1x4xf32>
    %cst = arith.constant 0.000000e+00 : f32
    %3 = vector.broadcast %cst : f32 to vector<1x4xf32>
    %4 = arith.subf %3, %2 : vector<1x4xf32>
    %5 = math.exp %4 : vector<1x4xf32>
    %6 = arith.mulf %5, %1 : vector<1x4xf32>
    %7 = arith.addf %6, %2 : vector<1x4xf32>
    %8 = vector.shape_cast %7 : vector<1x4xf32> to vector<1x1x4xf32>
    %cst_1 = arith.constant dense<0.000000e+00> : vector<1xf32>
    %9 = vector.multi_reduction <add>, %8, %cst_1 [1, 2] : vector<1x1x4xf32> to vector<1xf32>
    %10 = vector.shape_cast %9 : vector<1xf32> to vector<1x1x1xf32>
    %11 = vector.extract %10[0, 0, 0] : f32 from vector<1x1x1xf32>
    %c0_2 = arith.constant 0 : index
    %c0_3 = arith.constant 0 : index
    %12 = memref.load %arg1[%c0_2, %c0_3] : memref<1x1xf32, #tpu.memory_space<smem>>
    memref.store %11, %arg1[%c0_2, %c0_3] : memref<1x1xf32, #tpu.memory_space<smem>>
    return
  }
}

</mosaic_0001>

<llo_original>
// kernel: tpu_custom_call.1
$region0: #{tpu_custom_call.1}
  #allocation0 [shape = 'u32[]', space=smem, size = 0x4, offset = 0x4, fixed_abs, tag = 'smem constant byte address 0x4 - core index']
  #allocation1 [shape = 'u32[144,128]{1,0:T(1,128)}', space=vmem, size = 0x12000, scoped, tag = 'internal scratch']
  %s0 = inlined_call_operand.hbm [shape: f32[2,4], index: 0, kind: input, shape index: {}]
  %s1 = inlined_call_operand.hbm [shape: f32[1,1], index: 1, kind: output, shape index: {}]
  %s2 = sld [smem:[#allocation0]]
  $region18: #{tpu_custom_call.1} parent=0
    _
  %s4 = ssub.s32 1, %s2
  %s5 = scalar_select 0, %s4, %s2
  $region1: #{tpu_custom_call.1} parent=0
    #allocation2 [shape = 'u8[1024]{0}', space=vmem, size = 0x400, scoped, tag = 'input window, operand 0, single buffered']
    #allocation3 [shape = 's32[1]{0}', space=sflag, size = 0x4, scoped, tag = 'scoped memory for tpu_custom_call.1']
    #allocation4 [shape = 's32[1]{0}', space=sflag, size = 0x4, scoped, tag = 'scoped memory for tpu_custom_call.1']
    #allocation5 [shape = 'u8[512]{0}', space=smem, size = 0x200, scoped, tag = 'output window, operand 0, single buffered']
    %6 = vsyncpa [#allocation3], 0
    %7 = vsyncpa [#allocation4], 0
    // Predicated region
    $region2: #{tpu_custom_call.1} parent=1 // pred_check
      _
    $region3: #{tpu_custom_call.1} parent=1 // pred_check_branch
      %9 = sbr.rel (0) target = $region5
    $region4: #{tpu_custom_call.1} parent=1 // pred_region
      %s11 = ssub.s32 32, 32
      %12 = vsyncadd [#allocation3], %s11
      %s14 = sshll.u32 [#allocation2], 4
      %s15 = int_to_ptr.vmem [resolvable:$true] %s14
      %17 = dma.hbm_to_vmem [thread:$0]  %s0, 32, %s15, [#allocation3]
    $region5: #{tpu_custom_call.1} parent=1 // pred_fallthru
      _
    // Predicated region
    $region6: #{tpu_custom_call.1} parent=1 // pred_check
      _
    $region7: #{tpu_custom_call.1} parent=1 // pred_check_branch
      %19 = sbr.rel (0) target = $region9
    $region8: #{tpu_custom_call.1} parent=1 // pred_region
      %20 = dma.done [#allocation3], 32
    $region9: #{tpu_custom_call.1} parent=1 // pred_fallthru
      _
    %v21 = vld [vmem:[#allocation2] sm:$0x3]
    %v22 = vsub.f32 0.0, %v21
    %v23 = vmul.f32 %v22, 1.442695
    %v24 = vpow.pop %v23
    %v26 = vrot.slane %v21, 7
    %v28 = vmul.f32 %v24, %v26
    %v29 = vadd.f32 %v28, %v21
    %v31 = vrot.slane %v29, 1
    %vm33 = vcmask 24576
    %v34 = vsel %vm33, %v31, 0.0
    %35 = vadd.xlane.f32.xlu0 %v34
    %v36 = vpop.xlane.xlu0 %35
    %v37 = vrot.slane %v36, 4
    %v38 = vadd.f32 %v36, %v37
    %v39 = vrot.slane %v38, 2
    %v40 = vadd.f32 %v38, %v39
    %v41 = vrot.slane %v40, 1
    %v42 = vadd.f32 %v40, %v41
    %s43 = vtos %v42
    %s44 = scalar_lea.smem [#allocation5], 0
    %45 = sst [smem:[%s44]] %s43
    // Predicated region
    $region10: #{tpu_custom_call.1} parent=1 // pred_check
      _
    $region11: #{tpu_custom_call.1} parent=1 // pred_check_branch
      %47 = sbr.rel (0) target = $region13
    $region12: #{tpu_custom_call.1} parent=1 // pred_region
      %s49 = ssub.s32 16, 16
      %50 = vsyncadd [#allocation4], %s49
      %53 = dma.smem_to_hbm [#allocation5], 16, %s1, [#allocation4]
    $region13: #{tpu_custom_call.1} parent=1 // pred_fallthru
      _
    // Predicated region
    $region14: #{tpu_custom_call.1} parent=1 // pred_check
      _
    $region15: #{tpu_custom_call.1} parent=1 // pred_check_branch
      %55 = sbr.rel (0) target = $region17
    $region16: #{tpu_custom_call.1} parent=1 // pred_region
      %56 = dma.done [#allocation4], 16
    $region17: #{tpu_custom_call.1} parent=1 // pred_fallthru
      _
    %57 = sfence
    %58 = vsyncpa [#allocation3], 1
    %59 = vsyncpa [#allocation4], 1

</llo_original>
